<compile_context>
chip_gen: v5e
topology: v5e:2x2
jax: 0.10.0
libtpu: 0.0.40
codegen_flags: <defaults>
</compile_context>

<pallas_src>
import functools

import jax
import jax.numpy as jnp
from jax.experimental import pallas as pl
from jax.experimental.pallas import tpu as pltpu

_EPS = 1e-8          # torch.nn.functional.cosine_similarity default eps
_SCALING_FACTOR = 4.0


def _round_up(a, b):
    return ((a + b - 1) // b) * b


def _clip_classifier_kernel(x_ref, emb_ref, w_ref, mask_ref,
                            sims_t_ref, goe_t_ref, l1_t_ref,
                            *, use_sigmoid, use_relu):
    # x tile (TM, Dp) in source dtype; fused pre-normalized embeddings
    # (Rp, Dp); fused weights / real-row mask as lane-dense (1, Rp) rows.
    x = x_ref[...]                                          # (TM, Dp)
    emb = emb_ref[...]                                      # (Rp, Dp)
    w = w_ref[...]                                          # (1, Rp)
    mask = mask_ref[...]                                    # (1, Rp)

    # Raw similarities on the MXU, f32 accumulation, lane-dense over M:
    # (Rp, Dp) x (TM, Dp)^T -> (Rp, TM).  Embeddings are pre-L2-normalized,
    # so only the x row norm is still missing.
    sims_raw = jax.lax.dot_general(
        emb, x,
        dimension_numbers=(((1,), (1,)), ((), ())),
        preferred_element_type=jnp.float32)                 # (Rp, TM)

    # Row sum-of-squares of x, produced lane-dense as (1, TM) with a tiny
    # ones-row MXU matmul (no full-tile VPU normalization pass, no transpose).
    ones_row = jnp.ones((1, x.shape[1]), dtype=x.dtype)
    x_sq_t = jax.lax.dot_general(
        ones_row, x * x,
        dimension_numbers=(((1,), (1,)), ((), ())),
        preferred_element_type=jnp.float32)                 # (1, TM)

    # 1 / max(||x||, eps) == rsqrt(max(||x||^2, eps^2))  (single EUP op).
    inv_xn_t = jax.lax.rsqrt(jnp.maximum(x_sq_t, _EPS * _EPS))   # (1, TM)

    sims_t = sims_raw * inv_xn_t                            # (Rp, TM)

    if use_sigmoid:
        sims_t = jax.nn.sigmoid(sims_t * _SCALING_FACTOR)
    elif use_relu:
        sims_t = jnp.maximum(sims_t, 0.0)

    sims_t_ref[...] = sims_t

    # Fused weighted rubric sum -> per-(B,T) GOE prediction, lane-dense (1, TM).
    # Padded rubric rows carry weight 0, so they never contribute.
    goe_t_ref[...] = jax.lax.dot_general(
        w, sims_t,
        dimension_numbers=(((1,), (0,)), ((), ())),
        preferred_element_type=jnp.float32)                 # (1, TM)

    # Per-column l1 contribution over the REAL rubric rows only (mask zeros the
    # padded rows).  Padded M columns are sliced off in the wrapper before the
    # final sum, so sigmoid(0)=0.5 padding never leaks into the loss.
    l1_t_ref[...] = jax.lax.dot_general(
        mask, jnp.abs(sims_t),
        dimension_numbers=(((1,), (0,)), ((), ())),
        preferred_element_type=jnp.float32)                 # (1, TM)


def clip_classifier_forward(x, base_values, pos_emb, neg_emb, pos_w, neg_w,
                            *, use_sigmoid=True, use_relu=False,
                            l1_norm=True, tile_m=2048, compute_dtype=None):
    """JAX/Pallas equivalent of CLIPClassifer.forward (config in header).

    compute_dtype: optionally cast x / embeddings (e.g. jnp.bfloat16) before
    the kernel to halve the dominant HBM read; default keeps the source dtype
    (needed for the 1e-4 correctness check against the f32 reference).
    """
    B, T, D = x.shape
    M = B * T
    P = pos_emb.shape[0]
    N = neg_emb.shape[0]
    R = P + N

    # ---- grid-invariant preprocessing hoisted out of the kernel ------------
    D_pad = _round_up(D, 128)
    R_pad = _round_up(max(R, 8), 8)

    # Tile sizing: lane-aligned (multiple of 128) M tiles, as large as fits the
    # scoped-VMEM default, but capped so the "parallel" grid axis has >= 2
    # steps whenever M allows it (v7x megacore shards this axis across its two
    # TensorCores; a 1-step grid would idle one of them).
    M_128 = _round_up(M, 128)
    tile_m = _round_up(max(tile_m, 128), 128)
    if M_128 >= 2 * 128:
        tile_m = min(tile_m, (M_128 // 2) // 128 * 128)
    n_tiles = -(-M_128 // tile_m)
    tile_m = _round_up(-(-M_128 // n_tiles), 128)   # rebalance to cut padding
    M_pad = n_tiles * tile_m
    grid = (n_tiles,)

    # x kept in its source dtype (no wrapper up-cast unless requested);
    # zero-pad M and D (zero columns change neither dot products nor norms).
    x_flat = x.reshape(M, D)
    if compute_dtype is not None:
        x_flat = x_flat.astype(compute_dtype)
    x_flat = jnp.pad(x_flat, ((0, M_pad - M), (0, D_pad - D)))

    def l2_normalize(e):
        e = e.astype(jnp.float32)
        n = jnp.maximum(jnp.linalg.norm(e, axis=-1, keepdims=True), _EPS)
        return e / n

    # Fuse pos/neg embeddings into one pre-normalized operand, matched to the
    # x dtype so the MXU sees a single-dtype matmul.
    emb = jnp.concatenate([l2_normalize(pos_emb), l2_normalize(neg_emb)],
                          axis=0)                                   # (R, D)
    emb = jnp.pad(emb, ((0, R_pad - R), (0, D_pad - D)))            # (Rp, Dp)
    emb = emb.astype(x_flat.dtype)

    # Fused weights as a lane-dense row; padded rubric rows get weight 0.
    w_row = jnp.concatenate([pos_w.reshape(-1).astype(jnp.float32),
                             neg_w.reshape(-1).astype(jnp.float32)], axis=0)
    w_row = jnp.pad(w_row, (0, R_pad - R)).reshape(1, R_pad)        # (1, Rp)
    # Real-rubric-row mask for the in-kernel l1 reduction.
    mask_row = (jnp.arange(R_pad) < R).astype(jnp.float32).reshape(1, R_pad)

    kernel = functools.partial(_clip_classifier_kernel,
                               use_sigmoid=use_sigmoid, use_relu=use_relu)

    sims_t, goe_t, l1_t = pl.pallas_call(
        kernel,
        out_shape=(
            jax.ShapeDtypeStruct((R_pad, M_pad), jnp.float32),   # sims^T
            jax.ShapeDtypeStruct((1, M_pad), jnp.float32),       # goe^T
            jax.ShapeDtypeStruct((1, M_pad), jnp.float32),       # l1 per col
        ),
        grid_spec=pltpu.PrefetchScalarGridSpec(
            num_scalar_prefetch=0,
            grid=grid,
            in_specs=[
                pl.BlockSpec((tile_m, D_pad), lambda i: (i, 0)),   # x tile
                pl.BlockSpec((R_pad, D_pad), lambda i: (0, 0)),    # fused embs
                pl.BlockSpec((1, R_pad), lambda i: (0, 0)),        # weights row
                pl.BlockSpec((1, R_pad), lambda i: (0, 0)),        # row mask
            ],
            out_specs=[
                pl.BlockSpec((R_pad, tile_m), lambda i: (0, i)),   # lane-dense
                pl.BlockSpec((1, tile_m), lambda i: (0, i)),       # lane-dense
                pl.BlockSpec((1, tile_m), lambda i: (0, i)),       # lane-dense
            ],
        ),
        compiler_params=pltpu.CompilerParams(
            dimension_semantics=("parallel",)),
    )(x_flat, emb, w_row, mask_row)

    # Slice off padded rubric rows / padded M columns BEFORE any reduction
    # (sigmoid(0)=0.5 padding must never leak into outputs).
    pos_sims = sims_t[:P, :M].T.reshape(B, T, P)
    neg_sims = sims_t[P:R, :M].T.reshape(B, T, N)
    goe_predictions = goe_t[0, :M].reshape(B, T)

    # is_rg=False, rescaling=False branch of the module.
    out = jnp.sum(goe_predictions, axis=1) + jnp.sum(base_values, axis=1)

    return_dict = {
        "output": out,
        "goe_predictions": goe_predictions,
        "pos_rubric_cos_sims": pos_sims,
        "neg_rubric_cos_sims": neg_sims,
        "losses": {},
    }
    if l1_norm:
        # torch.norm(t, p=1) == sum(|t|); the per-column abs-sum over real
        # rubric rows was fused in-kernel -> only a (M,) sum remains here.
        return_dict["losses"]["l1_norm"] = 0.05 * jnp.sum(l1_t[0, :M])
    return return_dict


def _reference_forward(x, base_values, pos_emb, neg_emb, pos_w, neg_w,
                       use_sigmoid=True):
    """Plain-JAX reference used only for a correctness sanity check."""
    B, T, D = x.shape
    xf = x.reshape(-1, D)

    def cos(a, b):
        an = jnp.maximum(jnp.linalg.norm(a, axis=-1, keepdims=True), _EPS)
        bn = jnp.maximum(jnp.linalg.norm(b, axis=-1, keepdims=True), _EPS)
        return (a @ b.T) / (an * bn.T)

    ps = cos(xf, pos_emb).reshape(B, T, -1)
    ns = cos(xf, neg_emb).reshape(B, T, -1)
    if use_sigmoid:
        ps = jax.nn.sigmoid(ps * _SCALING_FACTOR)
        ns = jax.nn.sigmoid(ns * _SCALING_FACTOR)
    goe = jnp.sum(ps * pos_w, axis=2) + jnp.sum(ns * neg_w, axis=2)
    out = jnp.sum(goe, axis=1) + jnp.sum(base_values, axis=1)
    l1 = 0.05 * (jnp.sum(jnp.abs(ps)) + jnp.sum(jnp.abs(ns)))
    return out, goe, ps, ns, l1


if __name__ == "__main__":
    # Small, deterministic synthetic setup consistent with the forward pass:
    #   x: (B, T, D) CLIP video-frame embeddings, D = hidden dim
    #   positive rubric embeddings: (P, D), negative: (N, D)
    #   pos/neg weights: (P,), (N,); base_values: (B, K)
    B, T, D = 2, 8, 32
    P, N, K = 7, 5, 3

    key = jax.random.PRNGKey(0)
    kx, kb, kpe, kne, kpw, knw = jax.random.split(key, 6)
    x = jax.random.normal(kx, (B, T, D), dtype=jnp.float32)
    base_values = jax.random.normal(kb, (B, K), dtype=jnp.float32)
    pos_emb = jax.random.normal(kpe, (P, D), dtype=jnp.float32)
    neg_emb = jax.random.normal(kne, (N, D), dtype=jnp.float32)
    pos_w = jax.random.normal(kpw, (P,), dtype=jnp.float32)
    neg_w = jax.random.normal(knw, (N,), dtype=jnp.float32)

    result = clip_classifier_forward(x, base_values, pos_emb, neg_emb,
                                     pos_w, neg_w)
    jax.block_until_ready(result["output"])

    ref_out, ref_goe, ref_ps, ref_ns, ref_l1 = _reference_forward(
        x, base_values, pos_emb, neg_emb, pos_w, neg_w)
    assert jnp.allclose(result["output"], ref_out, atol=1e-4, rtol=1e-4)
    assert jnp.allclose(result["goe_predictions"], ref_goe,
                        atol=1e-4, rtol=1e-4)
    assert jnp.allclose(result["pos_rubric_cos_sims"], ref_ps,
                        atol=1e-4, rtol=1e-4)
    assert jnp.allclose(result["neg_rubric_cos_sims"], ref_ns,
                        atol=1e-4, rtol=1e-4)
    assert jnp.allclose(result["losses"]["l1_norm"], ref_l1,
                        atol=1e-4, rtol=1e-4)

    print("KERNEL_OK")
</pallas_src>

<mosaic_0001>
module attributes {stable_mosaic.version = 11 : i64} {
  func.func @_clip_classifier_kernel(%arg0: i32, %arg1: memref<128x128xf32, #tpu.memory_space<vmem>>, %arg2: memref<16x128xf32, #tpu.memory_space<vmem>>, %arg3: memref<1x16xf32, #tpu.memory_space<vmem>>, %arg4: memref<1x16xf32, #tpu.memory_space<vmem>>, %arg5: memref<16x128xf32, #tpu.memory_space<vmem>>, %arg6: memref<1x128xf32, #tpu.memory_space<vmem>>, %arg7: memref<1x128xf32, #tpu.memory_space<vmem>>) attributes {dimension_semantics = [#tpu.dimension_semantics<parallel>], iteration_bounds = array<i64: 1>, scalar_prefetch = 0 : i64, scratch_operands = 0 : i64, tpu.core_type = #tpu.core_type<tc>, window_params = [{transform_indices = @transform_0, window_bounds = array<i64: 128, 128>}, {pipeline_mode = #tpu.pipeline_mode<synchronous>, transform_indices = @transform_1, window_bounds = array<i64: 16, 128>}, {pipeline_mode = #tpu.pipeline_mode<synchronous>, transform_indices = @transform_2, window_bounds = array<i64: 1, 16>}, {pipeline_mode = #tpu.pipeline_mode<synchronous>, transform_indices = @transform_3, window_bounds = array<i64: 1, 16>}, {transform_indices = @transform_4, window_bounds = array<i64: 16, 128>}, {transform_indices = @transform_5, window_bounds = array<i64: 1, 128>}, {transform_indices = @transform_6, window_bounds = array<i64: 1, 128>}]} {
    %c0 = arith.constant 0 : index
    %c0_0 = arith.constant 0 : index
    %0 = vector.load %arg1[%c0, %c0_0] : memref<128x128xf32, #tpu.memory_space<vmem>>, vector<128x128xf32>
    %c0_1 = arith.constant 0 : index
    %c0_2 = arith.constant 0 : index
    %1 = vector.load %arg2[%c0_1, %c0_2] : memref<16x128xf32, #tpu.memory_space<vmem>>, vector<16x128xf32>
    %c0_3 = arith.constant 0 : index
    %c0_4 = arith.constant 0 : index
    %2 = vector.load %arg3[%c0_3, %c0_4] : memref<1x16xf32, #tpu.memory_space<vmem>>, vector<1x16xf32>
    %c0_5 = arith.constant 0 : index
    %c0_6 = arith.constant 0 : index
    %3 = vector.load %arg4[%c0_5, %c0_6] : memref<1x16xf32, #tpu.memory_space<vmem>>, vector<1x16xf32>
    %cst = arith.constant dense<0.000000e+00> : vector<16x128xf32>
    %4 = tpu.matmul %1, %0, %cst {dimension_numbers = #tpu.dot_dimension_numbers<[1], [1], [0], [0], [0, 0, 1, 0], [], []>} : vector<16x128xf32>, vector<128x128xf32>, vector<16x128xf32> -> vector<16x128xf32>
    %cst_7 = arith.constant 1.000000e+00 : f32
    %5 = vector.broadcast %cst_7 : f32 to vector<1x128xf32>
    %6 = arith.mulf %0, %0 : vector<128x128xf32>
    %cst_8 = arith.constant dense<0.000000e+00> : vector<1x128xf32>
    %7 = tpu.matmul %5, %6, %cst_8 {dimension_numbers = #tpu.dot_dimension_numbers<[1], [1], [0], [0], [0, 0, 1, 0], [], []>} : vector<1x128xf32>, vector<128x128xf32>, vector<1x128xf32> -> vector<1x128xf32>
    %cst_9 = arith.constant 1.000000e-16 : f32
    %8 = vector.broadcast %cst_9 : f32 to vector<1x128xf32>
    %9 = arith.maximumf %7, %8 : vector<1x128xf32>
    %10 = math.rsqrt %9 : vector<1x128xf32>
    %11 = vector.broadcast %10 : vector<1x128xf32> to vector<16x128xf32>
    %12 = arith.mulf %4, %11 : vector<16x128xf32>
    %cst_10 = arith.constant 4.000000e+00 : f32
    %13 = vector.broadcast %cst_10 : f32 to vector<16x128xf32>
    %14 = arith.mulf %12, %13 : vector<16x128xf32>
    %15 = arith.negf %14 : vector<16x128xf32>
    %16 = math.exp %15 : vector<16x128xf32>
    %cst_11 = arith.constant 1.000000e+00 : f32
    %17 = vector.broadcast %cst_11 : f32 to vector<16x128xf32>
    %18 = arith.addf %17, %16 : vector<16x128xf32>
    %19 = arith.divf %17, %18 : vector<16x128xf32>
    %c0_12 = arith.constant 0 : index
    %c0_13 = arith.constant 0 : index
    %20 = vector.load %arg5[%c0_12, %c0_13] : memref<16x128xf32, #tpu.memory_space<vmem>>, vector<16x128xf32>
    tpu.vector_store %arg5[%c0_12, %c0_13], %19 {strides = array<i32>} : memref<16x128xf32, #tpu.memory_space<vmem>>, vector<16x128xf32>,
    %cst_14 = arith.constant dense<0.000000e+00> : vector<1x128xf32>
    %21 = tpu.matmul %2, %19, %cst_14 {dimension_numbers = #tpu.dot_dimension_numbers<[1], [0], [0], [1], [0, 0, 1, 1], [], []>} : vector<1x16xf32>, vector<16x128xf32>, vector<1x128xf32> -> vector<1x128xf32>
    %c0_15 = arith.constant 0 : index
    %c0_16 = arith.constant 0 : index
    %22 = vector.load %arg6[%c0_15, %c0_16] : memref<1x128xf32, #tpu.memory_space<vmem>>, vector<1x128xf32>
    tpu.vector_store %arg6[%c0_15, %c0_16], %21 {strides = array<i32>} : memref<1x128xf32, #tpu.memory_space<vmem>>, vector<1x128xf32>,
    %23 = math.absf %19 : vector<16x128xf32>
    %cst_17 = arith.constant dense<0.000000e+00> : vector<1x128xf32>
    %24 = tpu.matmul %3, %23, %cst_17 {dimension_numbers = #tpu.dot_dimension_numbers<[1], [0], [0], [1], [0, 0, 1, 1], [], []>} : vector<1x16xf32>, vector<16x128xf32>, vector<1x128xf32> -> vector<1x128xf32>
    %c0_18 = arith.constant 0 : index
    %c0_19 = arith.constant 0 : index
    %25 = vector.load %arg7[%c0_18, %c0_19] : memref<1x128xf32, #tpu.memory_space<vmem>>, vector<1x128xf32>
    tpu.vector_store %arg7[%c0_18, %c0_19], %24 {strides = array<i32>} : memref<1x128xf32, #tpu.memory_space<vmem>>, vector<1x128xf32>,
    return
  }
  func.func @transform_0(%arg0: i32) -> (i32, i32) {
    %c0_i32 = arith.constant 0 : i32
    %c0_i32_0 = arith.constant 0 : i32
    return %arg0, %c0_i32 : i32, i32
  }
  func.func @transform_1(%arg0: i32) -> (i32, i32) {
    %c0_i32 = arith.constant 0 : i32
    %c0_i32_0 = arith.constant 0 : i32
    %c0_i32_1 = arith.constant 0 : i32
    return %c0_i32, %c0_i32_0 : i32, i32
  }
  func.func @transform_2(%arg0: i32) -> (i32, i32) {
    %c0_i32 = arith.constant 0 : i32
    %c0_i32_0 = arith.constant 0 : i32
    %c0_i32_1 = arith.constant 0 : i32
    return %c0_i32, %c0_i32_0 : i32, i32
  }
  func.func @transform_3(%arg0: i32) -> (i32, i32) {
    %c0_i32 = arith.constant 0 : i32
    %c0_i32_0 = arith.constant 0 : i32
    %c0_i32_1 = arith.constant 0 : i32
    return %c0_i32, %c0_i32_0 : i32, i32
  }
  func.func @transform_4(%arg0: i32) -> (i32, i32) {
    %c0_i32 = arith.constant 0 : i32
    %c0_i32_0 = arith.constant 0 : i32
    return %c0_i32, %arg0 : i32, i32
  }
  func.func @transform_5(%arg0: i32) -> (i32, i32) {
    %c0_i32 = arith.constant 0 : i32
    %c0_i32_0 = arith.constant 0 : i32
    return %c0_i32, %arg0 : i32, i32
  }
  func.func @transform_6(%arg0: i32) -> (i32, i32) {
    %c0_i32 = arith.constant 0 : i32
    %c0_i32_0 = arith.constant 0 : i32
    return %c0_i32, %arg0 : i32, i32
  }
}

</mosaic_0001>

<llo_original>
// kernel: tpu_custom_call.1
$region0: #{tpu_custom_call.1}
  #allocation0 [shape = 'u32[]', space=smem, size = 0x4, offset = 0x4, fixed_abs, tag = 'smem constant byte address 0x4 - core index']
  #allocation1 [shape = 'u32[72,128]{1,0:T(1,128)}', space=vmem, size = 0x9000, scoped, tag = 'internal scratch']
  %s0 = inlined_call_operand.hbm [shape: f32[128,128], index: 0, kind: input, shape index: {}]
  %s1 = inlined_call_operand.hbm [shape: f32[16,128], index: 1, kind: input, shape index: {}]
  %s2 = inlined_call_operand.vmem [shape: f32[1,16], index: 2, kind: input, shape index: {}]
  %s3 = inlined_call_operand.vmem [shape: f32[1,16], index: 3, kind: input, shape index: {}]
  %s4 = inlined_call_operand.hbm [shape: f32[16,128], index: 4, kind: output, shape index: {0}]
  %s5 = inlined_call_operand.hbm [shape: f32[1,128], index: 5, kind: output, shape index: {1}]
  %s6 = inlined_call_operand.hbm [shape: f32[1,128], index: 6, kind: output, shape index: {2}]
  %7 = xla_tuple %s4, %s5, %s6
  %s8 = sld [smem:[#allocation0]]
  $region50: #{tpu_custom_call.1} parent=0
    _
  %s10 = ssub.s32 1, %s8
  %s11 = scalar_select 0, %s10, %s8
  $region1: #{tpu_custom_call.1} parent=0
    #allocation2 [shape = 'u8[65536]{0}', space=vmem, size = 0x10000, scoped, tag = 'input window, operand 0, single buffered']
    #allocation3 [shape = 's32[1]{0}', space=sflag, size = 0x4, scoped, tag = 'scoped memory for tpu_custom_call.1']
    #allocation4 [shape = 's32[1]{0}', space=sflag, size = 0x4, scoped, tag = 'scoped memory for tpu_custom_call.1']
    #allocation5 [shape = 'u8[8192]{0}', space=vmem, size = 0x2000, scoped, tag = 'input window, operand 1, single buffered']
    #allocation6 [shape = 's32[1]{0}', space=sflag, size = 0x4, scoped, tag = 'scoped memory for tpu_custom_call.1']
    #allocation7 [shape = 'u8[8192]{0}', space=vmem, size = 0x2000, scoped, tag = 'output window, operand 0, single buffered']
    #allocation8 [shape = 'u8[512]{0}', space=vmem, size = 0x400, scoped, tag = 'output window, operand 1, single buffered']
    #allocation9 [shape = 's32[1]{0}', space=sflag, size = 0x4, scoped, tag = 'scoped memory for tpu_custom_call.1']
    #allocation10 [shape = 'u8[512]{0}', space=vmem, size = 0x400, scoped, tag = 'output window, operand 2, single buffered']
    %12 = vsyncpa [#allocation3], 0
    %13 = vsyncpa [#allocation6], 0
    %14 = vsyncpa [#allocation4], 0
    %15 = vsyncpa [#allocation9], 0
    // Predicated region
    $region2: #{tpu_custom_call.1} parent=1 // pred_check
      _
    $region3: #{tpu_custom_call.1} parent=1 // pred_check_branch
      %17 = sbr.rel (0) target = $region5
    $region4: #{tpu_custom_call.1} parent=1 // pred_region
      %19 = vsyncadd [#allocation3], 0
      %s20 = sshll.u32 %s0, 4
      %s21 = int_to_ptr.hbm [resolvable:$true] %s20
      %s22 = sshll.u32 [#allocation2], 4
      %s23 = int_to_ptr.vmem [resolvable:$true] %s22
      %28 = dma.hbm_to_vmem [thread:$0]  %s21, 2048, %s23, [#allocation3], 128, 128, 8
    $region5: #{tpu_custom_call.1} parent=1 // pred_fallthru
      _
    // Predicated region
    $region6: #{tpu_custom_call.1} parent=1 // pred_check
      _
    $region7: #{tpu_custom_call.1} parent=1 // pred_check_branch
      %30 = sbr.rel (0) target = $region9
    $region8: #{tpu_custom_call.1} parent=1 // pred_region
      %32 = vsyncadd [#allocation6], 0
      %s33 = sshll.u32 %s1, 4
      %s34 = int_to_ptr.hbm [resolvable:$true] %s33
      %s35 = sshll.u32 [#allocation5], 4
      %s36 = int_to_ptr.vmem [resolvable:$true] %s35
      %41 = dma.hbm_to_vmem [thread:$0]  %s34, 256, %s36, [#allocation6], 128, 128, 8
    $region9: #{tpu_custom_call.1} parent=1 // pred_fallthru
      _
    // Predicated region
    $region10: #{tpu_custom_call.1} parent=1 // pred_check
      _
    $region11: #{tpu_custom_call.1} parent=1 // pred_check_branch
      %43 = sbr.rel (0) target = $region13
    $region12: #{tpu_custom_call.1} parent=1 // pred_region
      _
    $region13: #{tpu_custom_call.1} parent=1 // pred_fallthru
      _
    // Predicated region
    $region14: #{tpu_custom_call.1} parent=1 // pred_check
      _
    $region15: #{tpu_custom_call.1} parent=1 // pred_check_branch
      %45 = sbr.rel (0) target = $region17
    $region16: #{tpu_custom_call.1} parent=1 // pred_region
      _
    $region17: #{tpu_custom_call.1} parent=1 // pred_fallthru
      _
    // Predicated region
    $region18: #{tpu_custom_call.1} parent=1 // pred_check
      _
    $region19: #{tpu_custom_call.1} parent=1 // pred_check_branch
      %47 = sbr.rel (0) target = $region21
    $region20: #{tpu_custom_call.1} parent=1 // pred_region
      %49 = dma.done [#allocation3], 2048
    $region21: #{tpu_custom_call.1} parent=1 // pred_fallthru
      _
    // Predicated region
    $region22: #{tpu_custom_call.1} parent=1 // pred_check
      _
    $region23: #{tpu_custom_call.1} parent=1 // pred_check_branch
      %51 = sbr.rel (0) target = $region25
    $region24: #{tpu_custom_call.1} parent=1 // pred_region
      %53 = dma.done [#allocation6], 256
    $region25: #{tpu_custom_call.1} parent=1 // pred_fallthru
      _
    %v54 = vld [vmem:[#allocation2] sm:$0xff]
    %v55 = vld [vmem:[#allocation2 + $0x8] sm:$0xff]
    %v56 = vld [vmem:[#allocation2 + $0x10] sm:$0xff]
    %v57 = vld [vmem:[#allocation2 + $0x18] sm:$0xff]
    %v58 = vld [vmem:[#allocation2 + $0x20] sm:$0xff]
    %v59 = vld [vmem:[#allocation2 + $0x28] sm:$0xff]
    %v60 = vld [vmem:[#allocation2 + $0x30] sm:$0xff]
    %v61 = vld [vmem:[#allocation2 + $0x38] sm:$0xff]
    %v62 = vld [vmem:[#allocation2 + $0x40] sm:$0xff]
    %v63 = vld [vmem:[#allocation2 + $0x48] sm:$0xff]
    %v64 = vld [vmem:[#allocation2 + $0x50] sm:$0xff]
    %v65 = vld [vmem:[#allocation2 + $0x58] sm:$0xff]
    %v66 = vld [vmem:[#allocation2 + $0x60] sm:$0xff]
    %v67 = vld [vmem:[#allocation2 + $0x68] sm:$0xff]
    %v68 = vld [vmem:[#allocation2 + $0x70] sm:$0xff]
    %v69 = vld [vmem:[#allocation2 + $0x78] sm:$0xff]
    %v70 = vld [vmem:[#allocation5] sm:$0xff]
    %v71 = vld [vmem:[#allocation5 + $0x8] sm:$0xff]
    %v72 = vld [vmem:[%s2] sm:$0x1]
    %v73 = vld [vmem:[%s3] sm:$0x1]
    %74 = vmatpush.xpose.msra.mxu0 %v69
    %75 = vmatpush.xpose.msra.mxu0 %v68
    %76 = vmatpush.xpose.msra.mxu0 %v67
    %77 = vmatpush.xpose.msra.mxu0 %v66
    %78 = vmatpush.xpose.msra.mxu0 %v65
    %79 = vmatpush.xpose.msra.mxu0 %v64
    %80 = vmatpush.xpose.msra.mxu0 %v63
    %81 = vmatpush.xpose.msra.mxu0 %v62
    %82 = vmatpush.xpose.msra.mxu0 %v61
    %83 = vmatpush.xpose.msra.mxu0 %v60
    %84 = vmatpush.xpose.msra.mxu0 %v59
    %85 = vmatpush.xpose.msra.mxu0 %v58
    %86 = vmatpush.xpose.msra.mxu0 %v57
    %87 = vmatpush.xpose.msra.mxu0 %v56
    %88 = vmatpush.xpose.msra.mxu0 %v55
    %89 = vmatpush.xpose.msra.mxu0 %v54
    %90 = vmatmul.f32.gmra.mxu0 %v70
    %v91 = vpop.f32.mrf.mxu0
    %v92 = vadd.f32 0.0, %v91
    %93 = vmatmul.f32.gmra.mxu0 %v71
    %v94 = vpop.f32.mrf.mxu0
    %v95 = vadd.f32 0.0, %v94
    %96 = vdwg.mxu0
    %v97 = vmul.f32 %v54, %v54
    %v98 = vmul.f32 %v55, %v55
    %v99 = vmul.f32 %v56, %v56
    %v100 = vmul.f32 %v57, %v57
    %v101 = vmul.f32 %v58, %v58
    %v102 = vmul.f32 %v59, %v59
    %v103 = vmul.f32 %v60, %v60
    %v104 = vmul.f32 %v61, %v61
    %v105 = vmul.f32 %v62, %v62
    %v106 = vmul.f32 %v63, %v63
    %v107 = vmul.f32 %v64, %v64
    %v108 = vmul.f32 %v65, %v65
    %v109 = vmul.f32 %v66, %v66
    %v110 = vmul.f32 %v67, %v67
    %v111 = vmul.f32 %v68, %v68
    %v112 = vmul.f32 %v69, %v69
    %113 = vmatpush.xpose.msra.mxu0 %v112
    %114 = vmatpush.xpose.msra.mxu0 %v111
    %115 = vmatpush.xpose.msra.mxu0 %v110
    %116 = vmatpush.xpose.msra.mxu0 %v109
    %117 = vmatpush.xpose.msra.mxu0 %v108
    %118 = vmatpush.xpose.msra.mxu0 %v107
    %119 = vmatpush.xpose.msra.mxu0 %v106
    %120 = vmatpush.xpose.msra.mxu0 %v105
    %121 = vmatpush.xpose.msra.mxu0 %v104
    %122 = vmatpush.xpose.msra.mxu0 %v103
    %123 = vmatpush.xpose.msra.mxu0 %v102
    %124 = vmatpush.xpose.msra.mxu0 %v101
    %125 = vmatpush.xpose.msra.mxu0 %v100
    %126 = vmatpush.xpose.msra.mxu0 %v99
    %127 = vmatpush.xpose.msra.mxu0 %v98
    %128 = vmatpush.xpose.msra.mxu0 %v97
    %129 = vmatmul.f32.gmra.mxu0 1.0
    %v130 = vpop.f32.mrf.mxu0
    %v131 = vadd.f32 0.0, %v130
    %132 = vdwg.mxu0
    %v133 = vmax.f32 %v131, 1e-16
    %v134 = vrsqrt.pop %v133
    %v135 = vmul.f32 %v134, %v133
    %v136 = vmul.f32 %v135, %v134
    %v137 = vmul.f32 0.5, %v136
    %v138 = vsub.f32 1.5, %v137
    %v139 = vmul.f32 %v134, %v138
    %vm140 = vweird.f32 %v133
    %vm141 = vweird.f32 %v134
    %vm142 = vmor %vm140, %vm141
    %v143 = vsel %vm142, %v134, %v139
    %v144 = vperm.slane %v143, 0
    %v145 = vmul.f32 %v92, %v144
    %v146 = vmul.f32 %v95, %v144
    %v147 = vmul.f32 %v145, 4.0
    %v148 = vmul.f32 %v146, 4.0
    %v149 = vxor.u32 %v147, 2147483648
    %v150 = vxor.u32 %v148, 2147483648
    %v151 = vmul.f32 %v149, 1.442695
    %v152 = vpow.pop %v151
    %v153 = vmul.f32 %v150, 1.442695
    %v154 = vpow.pop %v153
    %v155 = vadd.f32 %v152, 1.0
    %v156 = vadd.f32 %v154, 1.0
    %v157 = vrcp.pop %v155
    %v158 = vmul.f32 %v155, %v157
    %v159 = vsub.f32 1.0, %v158
    %v160 = vmul.f32 %v157, %v159
    %v161 = vadd.f32 %v157, %v160
    %vm162 = vweird.f32 %v155
    %vm163 = vweird.f32 %v157
    %vm164 = vmor %vm162, %vm163
    %v165 = vsel %vm164, %v157, %v161
    %v166 = vand.u32 2147483647, %v155
    %vm167 = vcmp.eq.f32.partialorder %v166, 8.507059e+37
    %v168 = vand.u32 %v155, 2147483648
    %v169 = vor.u32 1.1754944e-38, %v168
    %v170 = vsel %vm167, %v169, %v165
    %v171 = vmul.f32 1.0, %v170
    %v172 = vrcp.pop %v156
    %v173 = vmul.f32 %v156, %v172
    %v174 = vsub.f32 1.0, %v173
    %v175 = vmul.f32 %v172, %v174
    %v176 = vadd.f32 %v172, %v175
    %vm177 = vweird.f32 %v156
    %vm178 = vweird.f32 %v172
    %vm179 = vmor %vm177, %vm178
    %v180 = vsel %vm179, %v172, %v176
    %v181 = vand.u32 2147483647, %v156
    %vm182 = vcmp.eq.f32.partialorder %v181, 8.507059e+37
    %v183 = vand.u32 %v156, 2147483648
    %v184 = vor.u32 1.1754944e-38, %v183
    %v185 = vsel %vm182, %v184, %v180
    %v186 = vmul.f32 1.0, %v185
    %187 = vst [vmem:[#allocation7] sm:$0xff] %v171
    %188 = vst [vmem:[#allocation7 + $0x8] sm:$0xff] %v186
    %vm189 = vcmask 130048
    %v191 = vsel %vm189, %v72, 0
    %193 = vmatpush.msra.mxu0 0.0
    %194 = vmatpush.msra.mxu0 0.0
    %195 = vmatpush.msra.mxu0 0.0
    %196 = vmatpush.msra.mxu0 0.0
    %197 = vmatpush.msra.mxu0 0.0
    %198 = vmatpush.msra.mxu0 0.0
    %199 = vmatpush.msra.mxu0 0.0
    %200 = vmatpush.msra.mxu0 0.0
    %201 = vmatpush.msra.mxu0 0.0
    %202 = vmatpush.msra.mxu0 0.0
    %203 = vmatpush.msra.mxu0 0.0
    %204 = vmatpush.msra.mxu0 0.0
    %205 = vmatpush.msra.mxu0 0.0
    %206 = vmatpush.msra.mxu0 0.0
    %207 = vmatpush.msra.mxu0 %v186
    %208 = vmatpush.msra.mxu0 %v171
    %209 = vmatmul.f32.gmra.mxu0 %v191
    %v210 = vpop.f32.mrf.mxu0
    %v211 = vadd.f32 0.0, %v210
    %212 = vdwg.mxu0
    %213 = vst [vmem:[#allocation8] sm:$0x1] %v211
    %v214 = vand.u32 2147483647, %v171
    %v215 = vand.u32 2147483647, %v186
    %v217 = vsel %vm189, %v73, 0
    %219 = vmatpush.msra.mxu0 0.0
    %220 = vmatpush.msra.mxu0 0.0
    %221 = vmatpush.msra.mxu0 0.0
    %222 = vmatpush.msra.mxu0 0.0
    %223 = vmatpush.msra.mxu0 0.0
    %224 = vmatpush.msra.mxu0 0.0
    %225 = vmatpush.msra.mxu0 0.0
    %226 = vmatpush.msra.mxu0 0.0
    %227 = vmatpush.msra.mxu0 0.0
    %228 = vmatpush.msra.mxu0 0.0
    %229 = vmatpush.msra.mxu0 0.0
    %230 = vmatpush.msra.mxu0 0.0
    %231 = vmatpush.msra.mxu0 0.0
    %232 = vmatpush.msra.mxu0 0.0
    %233 = vmatpush.msra.mxu0 %v215
    %234 = vmatpush.msra.mxu0 %v214
    %235 = vmatmul.f32.gmra.mxu0 %v217
    %v236 = vpop.f32.mrf.mxu0
    %v237 = vadd.f32 0.0, %v236
    %238 = vdwg.mxu0
    %239 = vst [vmem:[#allocation10] sm:$0x1] %v237
    // Predicated region
    $region26: #{tpu_custom_call.1} parent=1 // pred_check
      _
    $region27: #{tpu_custom_call.1} parent=1 // pred_check_branch
      %241 = sbr.rel (0) target = $region29
    $region28: #{tpu_custom_call.1} parent=1 // pred_region
      %243 = vsyncadd [#allocation4], 0
      %s244 = sshll.u32 [#allocation7], 4
      %s245 = int_to_ptr.vmem [resolvable:$true] %s244
      %s246 = sshll.u32 %s4, 4
      %s247 = int_to_ptr.hbm [resolvable:$true] %s246
      %252 = dma.vmem_to_hbm [thread:$0]  %s245, 256, %s247, [#allocation4], 128, 128, 8
    $region29: #{tpu_custom_call.1} parent=1 // pred_fallthru
      _
    // Predicated region
    $region30: #{tpu_custom_call.1} parent=1 // pred_check
      _
    $region31: #{tpu_custom_call.1} parent=1 // pred_check_branch
      %254 = sbr.rel (0) target = $region33
    $region32: #{tpu_custom_call.1} parent=1 // pred_region
      %256 = vsyncadd [#allocation9], 0
      %s258 = sshll.u32 [#allocation8], 4
      %s259 = int_to_ptr.vmem [resolvable:$true] %s258
      %s260 = sshll.u32 %s5, 4
      %s261 = int_to_ptr.hbm [resolvable:$true] %s260
      %263 = dma.vmem_to_hbm [thread:$0]  %s259, 16, %s261, [#allocation9]
    $region33: #{tpu_custom_call.1} parent=1 // pred_fallthru
      _
    // Predicated region
    $region34: #{tpu_custom_call.1} parent=1 // pred_check
      _
    $region35: #{tpu_custom_call.1} parent=1 // pred_check_branch
      %265 = sbr.rel (0) target = $region37
    $region36: #{tpu_custom_call.1} parent=1 // pred_region
      %267 = vsyncadd [#allocation9], 0
      %s269 = sshll.u32 [#allocation10], 4
      %s270 = int_to_ptr.vmem [resolvable:$true] %s269
      %s271 = sshll.u32 %s6, 4
      %s272 = int_to_ptr.hbm [resolvable:$true] %s271
      %274 = dma.vmem_to_hbm [thread:$0]  %s270, 16, %s272, [#allocation9]
    $region37: #{tpu_custom_call.1} parent=1 // pred_fallthru
      _
    // Predicated region
    $region38: #{tpu_custom_call.1} parent=1 // pred_check
      _
    $region39: #{tpu_custom_call.1} parent=1 // pred_check_branch
      %276 = sbr.rel (0) target = $region41
    $region40: #{tpu_custom_call.1} parent=1 // pred_region
      %278 = dma.done [#allocation4], 256
    $region41: #{tpu_custom_call.1} parent=1 // pred_fallthru
      _
    // Predicated region
    $region42: #{tpu_custom_call.1} parent=1 // pred_check
      _
    $region43: #{tpu_custom_call.1} parent=1 // pred_check_branch
      %280 = sbr.rel (0) target = $region45
    $region44: #{tpu_custom_call.1} parent=1 // pred_region
      %282 = dma.done [#allocation9], 16
    $region45: #{tpu_custom_call.1} parent=1 // pred_fallthru
      _
    // Predicated region
    $region46: #{tpu_custom_call.1} parent=1 // pred_check
      _
    $region47: #{tpu_custom_call.1} parent=1 // pred_check_branch
      %284 = sbr.rel (0) target = $region49
    $region48: #{tpu_custom_call.1} parent=1 // pred_region
      %286 = dma.done [#allocation9], 16
    $region49: #{tpu_custom_call.1} parent=1 // pred_fallthru
      _
    %287 = vsyncpa [#allocation3], 1
    %288 = vsyncpa [#allocation6], 1
    %289 = vsyncpa [#allocation4], 1
    %290 = vsyncpa [#allocation9], 1

</llo_original>
